<compile_context>
chip_gen: v6e
topology: v6e:2x2x1
jax: 0.10.0
libtpu: 0.0.40
codegen_flags: <defaults>
</compile_context>

<pallas_src>
import jax
import jax.numpy as jnp
from jax import lax
from jax.experimental import pallas as pl
from jax.experimental.pallas import tpu as pltpu

_LANE = 128
_DEFAULT_TILE_B = 16384


def _round_up(n, m):
    return ((n + m - 1) // m) * m


def _sigmoid(z):
    # One EUP transcendental (tanh) per element instead of exp + divide.
    return 0.5 * (jnp.tanh(0.5 * z) + 1.0)


def _mlp_kernel(x_ref, w1_ref, b1_ref, w2_ref, b2_ref, w3_ref, b3_ref, oT_ref):
    x = x_ref[...]                                             # (tile_b, 5) native rows

    # Layer 1 + ReLU.  Contract the feature dim of both operands (q @ k.T style),
    # producing h1T = w1 @ x.T directly in lane-dense layout: (16, tile_b).
    h1 = lax.dot_general(w1_ref[...], x, (((1,), (1,)), ((), ())),
                         preferred_element_type=jnp.float32)
    h1 = jnp.maximum(h1 + b1_ref[...], 0.0)                    # (16, tile_b)

    # Layer 2 + Sigmoid (K=16 sublane-aligned).
    h2 = jnp.dot(w2_ref[...], h1, preferred_element_type=jnp.float32)
    h2 = _sigmoid(h2 + b2_ref[...])                            # (24, tile_b)

    # Layer 3 + Sigmoid (K=24 sublane-aligned).
    h3 = jnp.dot(w3_ref[...], h2, preferred_element_type=jnp.float32)
    oT_ref[...] = _sigmoid(h3 + b3_ref[...]).astype(oT_ref.dtype)   # (10, tile_b)


def _choose_tile_b(batch, requested):
    if requested is None:
        # Big tiles to amortize the ~0.35us per-grid-step cost, but keep >=4
        # steps when the batch is large so v7x megacore gets work on both cores.
        requested = min(_DEFAULT_TILE_B,
                        max(2048, _round_up(-(-batch // 4), _LANE)))
    if batch <= requested:
        return batch                                  # single full-extent block
    return _round_up(min(requested, batch), _LANE)    # 128-aligned multi-block tiles


def _pad_params(params):
    """Zero-pad weights/biases once to sublane-aligned shapes (math unchanged)."""
    f32 = jnp.float32
    w1, b1 = params["w1"], params["b1"]               # (10, 5), (10, 1)
    w2, b2 = params["w2"], params["b2"]               # (20, 10), (20, 1)
    w3, b3 = params["w3"], params["b3"]               # (10, 20), (10, 1)
    w1p = jnp.zeros((16, 5), f32).at[:10, :].set(w1.astype(f32))
    b1p = jnp.zeros((16, 1), f32).at[:10, :].set(b1.astype(f32))
    w2p = jnp.zeros((24, 16), f32).at[:20, :10].set(w2.astype(f32))
    b2p = jnp.zeros((24, 1), f32).at[:20, :].set(b2.astype(f32))
    w3p = jnp.zeros((10, 24), f32).at[:, :20].set(w3.astype(f32))
    b3p = b3.astype(f32)
    return w1p, b1p, w2p, b2p, w3p, b3p


def my_own_nn_forward(x, params, *, tile_b=None, out_dtype=jnp.float32,
                      transpose_output=True):
    """Forward pass of MyOwnNN.

    x: (B, 5) float array (PyTorch row-major convention, read in place).
    params: PyTorch-layout weights w{k}: (out, in), biases b{k}: (out, 1).
    Returns (B, 10) if transpose_output else the lane-dense (10, B) slab
    (zero extra HBM passes).
    """
    B, F = x.shape
    assert F == 5, "MyOwnNN expects 5 input features"
    x = x.astype(jnp.float32)

    w1p, b1p, w2p, b2p, w3p, b3p = _pad_params(params)

    tb = _choose_tile_b(B, tile_b)
    grid = (pl.cdiv(B, tb),)

    # VMEM budget: double-buffered (tile_b, 5) input block (128-lane padded ->
    # 512 B/row/buffer), double-buffered (10, tile_b) output, plus the f32
    # (16/24/16, tile_b) intermediates.  ~1.5 KiB/row -> ~25 MiB at 16384 rows.
    vmem_limit = int(min(56 * 2**20, max(32 * 2**20, 2048 * tb + (4 << 20))))

    yT = pl.pallas_call(
        _mlp_kernel,
        out_shape=jax.ShapeDtypeStruct((10, B), out_dtype),
        grid=grid,
        in_specs=[
            pl.BlockSpec((tb, 5), lambda i: (i, 0)),     # native input rows
            pl.BlockSpec((16, 5), lambda i: (0, 0)),     # w1 (resident, one-time fetch)
            pl.BlockSpec((16, 1), lambda i: (0, 0)),     # b1
            pl.BlockSpec((24, 16), lambda i: (0, 0)),    # w2
            pl.BlockSpec((24, 1), lambda i: (0, 0)),     # b2
            pl.BlockSpec((10, 24), lambda i: (0, 0)),    # w3
            pl.BlockSpec((10, 1), lambda i: (0, 0)),     # b3
        ],
        out_specs=pl.BlockSpec((10, tb), lambda i: (0, i)),
        compiler_params=pltpu.CompilerParams(
            dimension_semantics=("parallel",),           # megacore split on v7x
            vmem_limit_bytes=vmem_limit,
        ),
    )(x, w1p, b1p, w2p, b2p, w3p, b3p)

    if transpose_output:
        return yT.T          # PyTorch (B, 10) convention: the one remaining transpose
    return yT                # lane-dense (10, B), zero extra copies


def init_params(key):
    """PyTorch-default-style init: U(-1/sqrt(fan_in), 1/sqrt(fan_in)).
    Weights stored (out, in), biases (out, 1)."""
    def linear(key, fan_in, fan_out):
        kw, kb = jax.random.split(key)
        bound = 1.0 / jnp.sqrt(jnp.float32(fan_in))
        w = jax.random.uniform(kw, (fan_out, fan_in), jnp.float32, -bound, bound)
        b = jax.random.uniform(kb, (fan_out, 1), jnp.float32, -bound, bound)
        return w, b

    k1, k2, k3 = jax.random.split(key, 3)
    w1, b1 = linear(k1, 5, 10)
    w2, b2 = linear(k2, 10, 20)
    w3, b3 = linear(k3, 20, 10)
    return {"w1": w1, "b1": b1, "w2": w2, "b2": b2, "w3": w3, "b3": b3}


def _reference(x, p):
    h = jnp.maximum(x @ p["w1"].T + p["b1"].T, 0.0)
    h = jax.nn.sigmoid(h @ p["w2"].T + p["b2"].T)
    return jax.nn.sigmoid(h @ p["w3"].T + p["b3"].T)


if __name__ == "__main__":
    key = jax.random.PRNGKey(0)
    kx, kp, kx2 = jax.random.split(key, 3)
    params = init_params(kp)

    # Tolerance covers MXU/XLA default-precision (bf16-pass) f32 matmuls on
    # either side; real layout/math bugs would show errors of O(0.1-1).
    ATOL = RTOL = 2e-3

    # Primary test: small batch, single full-extent block, PyTorch (B, 10) output.
    B = 8
    x = jax.random.normal(kx, (B, 5), dtype=jnp.float32)
    out = jax.block_until_ready(my_own_nn_forward(x, params))
    ref = _reference(x, params)
    assert out.shape == (B, 10)
    assert jnp.allclose(out, ref, atol=ATOL, rtol=RTOL)

    # Secondary test: multi-step grid with a ragged last block (300 = 2*128 + 44)
    # and the zero-copy lane-dense output path.
    B2 = 300
    x2 = jax.random.normal(kx2, (B2, 5), dtype=jnp.float32)
    out2T = jax.block_until_ready(
        my_own_nn_forward(x2, params, tile_b=128, transpose_output=False))
    ref2 = _reference(x2, params)
    assert out2T.shape == (10, B2)
    assert jnp.allclose(out2T.T, ref2, atol=ATOL, rtol=RTOL)

    print("KERNEL_OK")
</pallas_src>

<mosaic_0001>
module attributes {stable_mosaic.version = 11 : i64} {
  func.func @_mlp_kernel(%arg0: i32, %arg1: memref<8x5xf32, #tpu.memory_space<vmem>>, %arg2: memref<16x5xf32, #tpu.memory_space<vmem>>, %arg3: memref<16x1xf32, #tpu.memory_space<vmem>>, %arg4: memref<24x16xf32, #tpu.memory_space<vmem>>, %arg5: memref<24x1xf32, #tpu.memory_space<vmem>>, %arg6: memref<10x24xf32, #tpu.memory_space<vmem>>, %arg7: memref<10x1xf32, #tpu.memory_space<vmem>>, %arg8: memref<10x8xf32, #tpu.memory_space<vmem>>) attributes {dimension_semantics = [#tpu.dimension_semantics<parallel>], iteration_bounds = array<i64: 1>, scalar_prefetch = 0 : i64, scratch_operands = 0 : i64, tpu.core_type = #tpu.core_type<tc>, window_params = [{transform_indices = @transform_0, window_bounds = array<i64: 8, 5>}, {pipeline_mode = #tpu.pipeline_mode<synchronous>, transform_indices = @transform_1, window_bounds = array<i64: 16, 5>}, {pipeline_mode = #tpu.pipeline_mode<synchronous>, transform_indices = @transform_2, window_bounds = array<i64: 16, 1>}, {pipeline_mode = #tpu.pipeline_mode<synchronous>, transform_indices = @transform_3, window_bounds = array<i64: 24, 16>}, {pipeline_mode = #tpu.pipeline_mode<synchronous>, transform_indices = @transform_4, window_bounds = array<i64: 24, 1>}, {pipeline_mode = #tpu.pipeline_mode<synchronous>, transform_indices = @transform_5, window_bounds = array<i64: 10, 24>}, {pipeline_mode = #tpu.pipeline_mode<synchronous>, transform_indices = @transform_6, window_bounds = array<i64: 10, 1>}, {transform_indices = @transform_7, window_bounds = array<i64: 10, 8>}]} {
    %c0 = arith.constant 0 : index
    %c0_0 = arith.constant 0 : index
    %0 = vector.load %arg1[%c0, %c0_0] : memref<8x5xf32, #tpu.memory_space<vmem>>, vector<8x5xf32>
    %c0_1 = arith.constant 0 : index
    %c0_2 = arith.constant 0 : index
    %1 = vector.load %arg2[%c0_1, %c0_2] : memref<16x5xf32, #tpu.memory_space<vmem>>, vector<16x5xf32>
    %cst = arith.constant dense<0.000000e+00> : vector<16x8xf32>
    %2 = tpu.matmul %1, %0, %cst {dimension_numbers = #tpu.dot_dimension_numbers<[1], [1], [0], [0], [0, 0, 1, 0], [], []>} : vector<16x5xf32>, vector<8x5xf32>, vector<16x8xf32> -> vector<16x8xf32>
    %c0_3 = arith.constant 0 : index
    %c0_4 = arith.constant 0 : index
    %3 = vector.load %arg3[%c0_3, %c0_4] : memref<16x1xf32, #tpu.memory_space<vmem>>, vector<16x1xf32>
    %4 = vector.broadcast %3 : vector<16x1xf32> to vector<16x8xf32>
    %5 = arith.addf %2, %4 : vector<16x8xf32>
    %cst_5 = arith.constant 0.000000e+00 : f32
    %6 = vector.broadcast %cst_5 : f32 to vector<16x8xf32>
    %7 = arith.maximumf %5, %6 : vector<16x8xf32>
    %c0_6 = arith.constant 0 : index
    %c0_7 = arith.constant 0 : index
    %8 = vector.load %arg4[%c0_6, %c0_7] : memref<24x16xf32, #tpu.memory_space<vmem>>, vector<24x16xf32>
    %cst_8 = arith.constant dense<0.000000e+00> : vector<24x8xf32>
    %9 = tpu.matmul %8, %7, %cst_8 {dimension_numbers = #tpu.dot_dimension_numbers<[1], [0], [0], [1], [0, 0, 1, 1], [], []>} : vector<24x16xf32>, vector<16x8xf32>, vector<24x8xf32> -> vector<24x8xf32>
    %c0_9 = arith.constant 0 : index
    %c0_10 = arith.constant 0 : index
    %10 = vector.load %arg5[%c0_9, %c0_10] : memref<24x1xf32, #tpu.memory_space<vmem>>, vector<24x1xf32>
    %11 = vector.broadcast %10 : vector<24x1xf32> to vector<24x8xf32>
    %12 = arith.addf %9, %11 : vector<24x8xf32>
    %cst_11 = arith.constant 5.000000e-01 : f32
    %13 = vector.broadcast %cst_11 : f32 to vector<24x8xf32>
    %14 = arith.mulf %13, %12 : vector<24x8xf32>
    %15 = math.tanh %14 : vector<24x8xf32>
    %cst_12 = arith.constant 1.000000e+00 : f32
    %16 = vector.broadcast %cst_12 : f32 to vector<24x8xf32>
    %17 = arith.addf %15, %16 : vector<24x8xf32>
    %cst_13 = arith.constant 5.000000e-01 : f32
    %18 = vector.broadcast %cst_13 : f32 to vector<24x8xf32>
    %19 = arith.mulf %18, %17 : vector<24x8xf32>
    %c0_14 = arith.constant 0 : index
    %c0_15 = arith.constant 0 : index
    %20 = vector.load %arg6[%c0_14, %c0_15] : memref<10x24xf32, #tpu.memory_space<vmem>>, vector<10x24xf32>
    %cst_16 = arith.constant dense<0.000000e+00> : vector<10x8xf32>
    %21 = tpu.matmul %20, %19, %cst_16 {dimension_numbers = #tpu.dot_dimension_numbers<[1], [0], [0], [1], [0, 0, 1, 1], [], []>} : vector<10x24xf32>, vector<24x8xf32>, vector<10x8xf32> -> vector<10x8xf32>
    %c0_17 = arith.constant 0 : index
    %c0_18 = arith.constant 0 : index
    %22 = vector.load %arg7[%c0_17, %c0_18] : memref<10x1xf32, #tpu.memory_space<vmem>>, vector<10x1xf32>
    %23 = vector.broadcast %22 : vector<10x1xf32> to vector<10x8xf32>
    %24 = arith.addf %21, %23 : vector<10x8xf32>
    %cst_19 = arith.constant 5.000000e-01 : f32
    %25 = vector.broadcast %cst_19 : f32 to vector<10x8xf32>
    %26 = arith.mulf %25, %24 : vector<10x8xf32>
    %27 = math.tanh %26 : vector<10x8xf32>
    %cst_20 = arith.constant 1.000000e+00 : f32
    %28 = vector.broadcast %cst_20 : f32 to vector<10x8xf32>
    %29 = arith.addf %27, %28 : vector<10x8xf32>
    %cst_21 = arith.constant 5.000000e-01 : f32
    %30 = vector.broadcast %cst_21 : f32 to vector<10x8xf32>
    %31 = arith.mulf %30, %29 : vector<10x8xf32>
    %c0_22 = arith.constant 0 : index
    %c0_23 = arith.constant 0 : index
    %32 = vector.load %arg8[%c0_22, %c0_23] : memref<10x8xf32, #tpu.memory_space<vmem>>, vector<10x8xf32>
    tpu.vector_store %arg8[%c0_22, %c0_23], %31 {strides = array<i32>} : memref<10x8xf32, #tpu.memory_space<vmem>>, vector<10x8xf32>,
    return
  }
  func.func @transform_0(%arg0: i32) -> (i32, i32) {
    %c0_i32 = arith.constant 0 : i32
    %c0_i32_0 = arith.constant 0 : i32
    return %arg0, %c0_i32 : i32, i32
  }
  func.func @transform_1(%arg0: i32) -> (i32, i32) {
    %c0_i32 = arith.constant 0 : i32
    %c0_i32_0 = arith.constant 0 : i32
    %c0_i32_1 = arith.constant 0 : i32
    return %c0_i32, %c0_i32_0 : i32, i32
  }
  func.func @transform_2(%arg0: i32) -> (i32, i32) {
    %c0_i32 = arith.constant 0 : i32
    %c0_i32_0 = arith.constant 0 : i32
    %c0_i32_1 = arith.constant 0 : i32
    return %c0_i32, %c0_i32_0 : i32, i32
  }
  func.func @transform_3(%arg0: i32) -> (i32, i32) {
    %c0_i32 = arith.constant 0 : i32
    %c0_i32_0 = arith.constant 0 : i32
    %c0_i32_1 = arith.constant 0 : i32
    return %c0_i32, %c0_i32_0 : i32, i32
  }
  func.func @transform_4(%arg0: i32) -> (i32, i32) {
    %c0_i32 = arith.constant 0 : i32
    %c0_i32_0 = arith.constant 0 : i32
    %c0_i32_1 = arith.constant 0 : i32
    return %c0_i32, %c0_i32_0 : i32, i32
  }
  func.func @transform_5(%arg0: i32) -> (i32, i32) {
    %c0_i32 = arith.constant 0 : i32
    %c0_i32_0 = arith.constant 0 : i32
    %c0_i32_1 = arith.constant 0 : i32
    return %c0_i32, %c0_i32_0 : i32, i32
  }
  func.func @transform_6(%arg0: i32) -> (i32, i32) {
    %c0_i32 = arith.constant 0 : i32
    %c0_i32_0 = arith.constant 0 : i32
    %c0_i32_1 = arith.constant 0 : i32
    return %c0_i32, %c0_i32_0 : i32, i32
  }
  func.func @transform_7(%arg0: i32) -> (i32, i32) {
    %c0_i32 = arith.constant 0 : i32
    %c0_i32_0 = arith.constant 0 : i32
    return %c0_i32, %arg0 : i32, i32
  }
}

</mosaic_0001>

<llo_original>
// kernel: tpu_custom_call.1
$region0: #{tpu_custom_call.1}
  #allocation0 [shape = 'u32[]', space=smem, size = 0x4, offset = 0x4, fixed_abs, tag = 'smem constant byte address 0x4 - core index']
  #allocation1 [shape = 'u32[144,128]{1,0:T(1,128)}', space=vmem, size = 0x12000, scoped, tag = 'internal scratch']
  %s0 = inlined_call_operand.vmem [shape: f32[8,5], index: 0, kind: input, shape index: {}]
  %s1 = inlined_call_operand.vmem [shape: f32[16,5], index: 1, kind: input, shape index: {}]
  %s2 = inlined_call_operand.vmem [shape: f32[16,1], index: 2, kind: input, shape index: {}]
  %s3 = inlined_call_operand.vmem [shape: f32[24,16], index: 3, kind: input, shape index: {}]
  %s4 = inlined_call_operand.vmem [shape: f32[24,1], index: 4, kind: input, shape index: {}]
  %s5 = inlined_call_operand.vmem [shape: f32[10,24], index: 5, kind: input, shape index: {}]
  %s6 = inlined_call_operand.vmem [shape: f32[10,1], index: 6, kind: input, shape index: {}]
  %s7 = inlined_call_operand.vmem [shape: f32[10,8], index: 7, kind: output, shape index: {}]
  %s8 = sld [smem:[#allocation0]]
  $region38: #{tpu_custom_call.1} parent=0
    _
  %s10 = ssub.s32 1, %s8
  %s11 = scalar_select 0, %s10, %s8
  // Predicated region
  $region2: #{tpu_custom_call.1} parent=0 // pred_check
    _
  $region3: #{tpu_custom_call.1} parent=0 // pred_check_branch
    %13 = sbr.rel (0) target = $region5
  $region4: #{tpu_custom_call.1} parent=0 // pred_region
    _
  $region5: #{tpu_custom_call.1} parent=0 // pred_fallthru
    _
  // Predicated region
  $region6: #{tpu_custom_call.1} parent=0 // pred_check
    _
  $region7: #{tpu_custom_call.1} parent=0 // pred_check_branch
    %15 = sbr.rel (0) target = $region9
  $region8: #{tpu_custom_call.1} parent=0 // pred_region
    _
  $region9: #{tpu_custom_call.1} parent=0 // pred_fallthru
    _
  // Predicated region
  $region10: #{tpu_custom_call.1} parent=0 // pred_check
    _
  $region11: #{tpu_custom_call.1} parent=0 // pred_check_branch
    %17 = sbr.rel (0) target = $region13
  $region12: #{tpu_custom_call.1} parent=0 // pred_region
    _
  $region13: #{tpu_custom_call.1} parent=0 // pred_fallthru
    _
  // Predicated region
  $region14: #{tpu_custom_call.1} parent=0 // pred_check
    _
  $region15: #{tpu_custom_call.1} parent=0 // pred_check_branch
    %19 = sbr.rel (0) target = $region17
  $region16: #{tpu_custom_call.1} parent=0 // pred_region
    _
  $region17: #{tpu_custom_call.1} parent=0 // pred_fallthru
    _
  // Predicated region
  $region18: #{tpu_custom_call.1} parent=0 // pred_check
    _
  $region19: #{tpu_custom_call.1} parent=0 // pred_check_branch
    %21 = sbr.rel (0) target = $region21
  $region20: #{tpu_custom_call.1} parent=0 // pred_region
    _
  $region21: #{tpu_custom_call.1} parent=0 // pred_fallthru
    _
  // Predicated region
  $region22: #{tpu_custom_call.1} parent=0 // pred_check
    _
  $region23: #{tpu_custom_call.1} parent=0 // pred_check_branch
    %23 = sbr.rel (0) target = $region25
  $region24: #{tpu_custom_call.1} parent=0 // pred_region
    _
  $region25: #{tpu_custom_call.1} parent=0 // pred_fallthru
    _
  // Predicated region
  $region26: #{tpu_custom_call.1} parent=0 // pred_check
    _
  $region27: #{tpu_custom_call.1} parent=0 // pred_check_branch
    %25 = sbr.rel (0) target = $region29
  $region28: #{tpu_custom_call.1} parent=0 // pred_region
    _
  $region29: #{tpu_custom_call.1} parent=0 // pred_fallthru
    _
  %v26 = vld [vmem:[%s0] sm:$0xff]
  %v27 = vld [vmem:[%s1] sm:$0xff]
  %v28 = vld [vmem:[%s1 + $0x8] sm:$0xff]
  %v29 = vld [vmem:[%s2] sm:$0xff]
  %v30 = vld [vmem:[%s2 + $0x8] sm:$0xff]
  %32 = vset.pattern.permute.xlu0 0
  %33 = vperm.xlu0 %32, %v29
  %v34 = vpop.permute.xlu0 %33
  %37 = vset.pattern.permute.xlu0 0
  %38 = vperm.xlu0 %37, %v30
  %v39 = vpop.permute.xlu0 %38
  %vm41 = vcmask 39936
  %v43 = vsel %vm41, %v27, 0
  %v46 = vsel %vm41, %v28, 0
  %v49 = vsel %vm41, %v26, 0
  %51 = vmatprep.subr.mxu0 0.0
  %52 = vmatpush1.xpose.msra.mxu0 0.0
  %53 = vmatprep.subr.mxu0 0.0
  %54 = vmatpush1.xpose.msra.mxu0 0.0
  %55 = vmatprep.subr.mxu0 0.0
  %56 = vmatpush1.xpose.msra.mxu0 0.0
  %57 = vmatprep.subr.mxu0 0.0
  %58 = vmatpush1.xpose.msra.mxu0 0.0
  %59 = vmatprep.subr.mxu0 0.0
  %60 = vmatpush1.xpose.msra.mxu0 0.0
  %61 = vmatprep.subr.mxu0 0.0
  %62 = vmatpush1.xpose.msra.mxu0 0.0
  %63 = vmatprep.subr.mxu0 0.0
  %64 = vmatpush1.xpose.msra.mxu0 0.0
  %65 = vmatprep.subr.mxu0 0.0
  %66 = vmatpush1.xpose.msra.mxu0 0.0
  %67 = vmatprep.subr.mxu0 0.0
  %68 = vmatpush1.xpose.msra.mxu0 0.0
  %69 = vmatprep.subr.mxu0 0.0
  %70 = vmatpush1.xpose.msra.mxu0 0.0
  %71 = vmatprep.subr.mxu0 0.0
  %72 = vmatpush1.xpose.msra.mxu0 0.0
  %73 = vmatprep.subr.mxu0 0.0
  %74 = vmatpush1.xpose.msra.mxu0 0.0
  %75 = vmatprep.subr.mxu0 0.0
  %76 = vmatpush1.xpose.msra.mxu0 0.0
  %77 = vmatprep.subr.mxu0 0.0
  %78 = vmatpush1.xpose.msra.mxu0 0.0
  %79 = vmatprep.subr.mxu0 0.0
  %80 = vmatpush1.xpose.msra.mxu0 0.0
  %81 = vmatprep.subr.mxu0 0.0
  %82 = vmatpush1.xpose.msra.mxu0 %v49
  %83 = vmatprep.subr.mxu0 0.0
  %84 = vmatpush2.xpose.msra.mxu0 0.0
  %85 = vmatprep.subr.mxu0 0.0
  %86 = vmatpush2.xpose.msra.mxu0 0.0
  %87 = vmatprep.subr.mxu0 0.0
  %88 = vmatpush2.xpose.msra.mxu0 0.0
  %89 = vmatprep.subr.mxu0 0.0
  %90 = vmatpush2.xpose.msra.mxu0 0.0
  %91 = vmatprep.subr.mxu0 0.0
  %92 = vmatpush2.xpose.msra.mxu0 0.0
  %93 = vmatprep.subr.mxu0 0.0
  %94 = vmatpush2.xpose.msra.mxu0 0.0
  %95 = vmatprep.subr.mxu0 0.0
  %96 = vmatpush2.xpose.msra.mxu0 0.0
  %97 = vmatprep.subr.mxu0 0.0
  %98 = vmatpush2.xpose.msra.mxu0 0.0
  %99 = vmatprep.subr.mxu0 0.0
  %100 = vmatpush2.xpose.msra.mxu0 0.0
  %101 = vmatprep.subr.mxu0 0.0
  %102 = vmatpush2.xpose.msra.mxu0 0.0
  %103 = vmatprep.subr.mxu0 0.0
  %104 = vmatpush2.xpose.msra.mxu0 0.0
  %105 = vmatprep.subr.mxu0 0.0
  %106 = vmatpush2.xpose.msra.mxu0 0.0
  %107 = vmatprep.subr.mxu0 0.0
  %108 = vmatpush2.xpose.msra.mxu0 0.0
  %109 = vmatprep.subr.mxu0 0.0
  %110 = vmatpush2.xpose.msra.mxu0 0.0
  %111 = vmatprep.subr.mxu0 0.0
  %112 = vmatpush2.xpose.msra.mxu0 0.0
  %113 = vmatprep.subr.mxu0 0.0
  %114 = vmatpush2.xpose.msra.mxu0 0.0
  %115 = vmatprep.mubr.f32.mxu0 0.0
  %116 = vmatmul.mubr.f32.gmra.mxu0 %v43
  %v117 = vpop.f32.mrf.mxu0
  %v118 = vadd.f32 %v34, %v117
  %v119 = vpop.f32.mrf.mxu0
  %120 = vmatprep.mubr.f32.mxu0 0.0
  %121 = vmatmul.mubr.f32.gmra.mxu0 %v46
  %v122 = vpop.f32.mrf.mxu0
  %v123 = vadd.f32 %v39, %v122
  %v124 = vpop.f32.mrf.mxu0
  %125 = vdwg.mxu0
  %v126 = vmax.f32 %v118, 0.0
  %v127 = vmax.f32 %v123, 0.0
  %v128 = vld [vmem:[%s3] sm:$0xff]
  %v129 = vld [vmem:[%s3 + $0x8] sm:$0xff]
  %v130 = vld [vmem:[%s3 + $0x10] sm:$0xff]
  %v131 = vld [vmem:[%s4] sm:$0xff]
  %v132 = vld [vmem:[%s4 + $0x8] sm:$0xff]
  %v133 = vld [vmem:[%s4 + $0x10] sm:$0xff]
  %135 = vset.pattern.permute.xlu0 0
  %136 = vperm.xlu0 %135, %v131
  %v137 = vpop.permute.xlu0 %136
  %140 = vset.pattern.permute.xlu0 0
  %141 = vperm.xlu0 %140, %v132
  %v142 = vpop.permute.xlu0 %141
  %145 = vset.pattern.permute.xlu0 0
  %146 = vperm.xlu0 %145, %v133
  %v147 = vpop.permute.xlu0 %146
  %vm149 = vcmask 130048
  %v151 = vsel %vm149, %v128, 0
  %v154 = vsel %vm149, %v129, 0
  %v157 = vsel %vm149, %v130, 0
  %159 = vmatprep.subr.mxu0 0.0
  %160 = vmatpush1.msra.mxu0 0.0
  %161 = vmatprep.subr.mxu0 0.0
  %162 = vmatpush1.msra.mxu0 0.0
  %163 = vmatprep.subr.mxu0 0.0
  %164 = vmatpush1.msra.mxu0 0.0
  %165 = vmatprep.subr.mxu0 0.0
  %166 = vmatpush1.msra.mxu0 0.0
  %167 = vmatprep.subr.mxu0 0.0
  %168 = vmatpush1.msra.mxu0 0.0
  %169 = vmatprep.subr.mxu0 0.0
  %170 = vmatpush1.msra.mxu0 0.0
  %171 = vmatprep.subr.mxu0 0.0
  %172 = vmatpush1.msra.mxu0 0.0
  %173 = vmatprep.subr.mxu0 0.0
  %174 = vmatpush1.msra.mxu0 0.0
  %175 = vmatprep.subr.mxu0 0.0
  %176 = vmatpush1.msra.mxu0 0.0
  %177 = vmatprep.subr.mxu0 0.0
  %178 = vmatpush1.msra.mxu0 0.0
  %179 = vmatprep.subr.mxu0 0.0
  %180 = vmatpush1.msra.mxu0 0.0
  %181 = vmatprep.subr.mxu0 0.0
  %182 = vmatpush1.msra.mxu0 0.0
  %183 = vmatprep.subr.mxu0 0.0
  %184 = vmatpush1.msra.mxu0 0.0
  %185 = vmatprep.subr.mxu0 0.0
  %186 = vmatpush1.msra.mxu0 0.0
  %187 = vmatprep.subr.mxu0 0.0
  %188 = vmatpush1.msra.mxu0 %v127
  %189 = vmatprep.subr.mxu0 0.0
  %190 = vmatpush1.msra.mxu0 %v126
  %191 = vmatprep.subr.mxu0 0.0
  %192 = vmatpush2.msra.mxu0 0.0
  %193 = vmatprep.subr.mxu0 0.0
  %194 = vmatpush2.msra.mxu0 0.0
  %195 = vmatprep.subr.mxu0 0.0
  %196 = vmatpush2.msra.mxu0 0.0
  %197 = vmatprep.subr.mxu0 0.0
  %198 = vmatpush2.msra.mxu0 0.0
  %199 = vmatprep.subr.mxu0 0.0
  %200 = vmatpush2.msra.mxu0 0.0
  %201 = vmatprep.subr.mxu0 0.0
  %202 = vmatpush2.msra.mxu0 0.0
  %203 = vmatprep.subr.mxu0 0.0
  %204 = vmatpush2.msra.mxu0 0.0
  %205 = vmatprep.subr.mxu0 0.0
  %206 = vmatpush2.msra.mxu0 0.0
  %207 = vmatprep.subr.mxu0 0.0
  %208 = vmatpush2.msra.mxu0 0.0
  %209 = vmatprep.subr.mxu0 0.0
  %210 = vmatpush2.msra.mxu0 0.0
  %211 = vmatprep.subr.mxu0 0.0
  %212 = vmatpush2.msra.mxu0 0.0
  %213 = vmatprep.subr.mxu0 0.0
  %214 = vmatpush2.msra.mxu0 0.0
  %215 = vmatprep.subr.mxu0 0.0
  %216 = vmatpush2.msra.mxu0 0.0
  %217 = vmatprep.subr.mxu0 0.0
  %218 = vmatpush2.msra.mxu0 0.0
  %219 = vmatprep.subr.mxu0 0.0
  %220 = vmatpush2.msra.mxu0 0.0
  %221 = vmatprep.subr.mxu0 0.0
  %222 = vmatpush2.msra.mxu0 0.0
  %223 = vmatprep.mubr.f32.mxu0 0.0
  %224 = vmatmul.mubr.f32.gmra.mxu0 %v151
  %v225 = vpop.f32.mrf.mxu0
  %v226 = vadd.f32 %v137, %v225
  %v227 = vpop.f32.mrf.mxu0
  %228 = vmatprep.mubr.f32.mxu0 0.0
  %229 = vmatmul.mubr.f32.gmra.mxu0 %v154
  %v230 = vpop.f32.mrf.mxu0
  %v231 = vadd.f32 %v142, %v230
  %v232 = vpop.f32.mrf.mxu0
  %233 = vmatprep.mubr.f32.mxu0 0.0
  %234 = vmatmul.mubr.f32.gmra.mxu0 %v157
  %v235 = vpop.f32.mrf.mxu0
  %v236 = vadd.f32 %v147, %v235
  %v237 = vpop.f32.mrf.mxu0
  %238 = vdwg.mxu0
  %v239 = vmul.f32 %v226, 0.5
  %v240 = vmul.f32 %v231, 0.5
  %v241 = vmul.f32 %v236, 0.5
  %v242 = vtanh.pop %v239
  %v243 = vtanh.pop %v240
  %v244 = vtanh.pop %v241
  %v245 = vadd.f32 %v242, 1.0
  %v246 = vadd.f32 %v243, 1.0
  %v247 = vadd.f32 %v244, 1.0
  %v248 = vmul.f32 %v245, 0.5
  %v249 = vmul.f32 %v246, 0.5
  %v250 = vmul.f32 %v247, 0.5
  %v251 = vld [vmem:[%s5] sm:$0xff]
  %v252 = vld [vmem:[%s5 + $0x8] sm:$0x3]
  %v253 = vld [vmem:[%s6] sm:$0xff]
  %v254 = vld [vmem:[%s6 + $0x8] sm:$0x3]
  %256 = vset.pattern.permute.xlu0 0
  %257 = vperm.xlu0 %256, %v253
  %v258 = vpop.permute.xlu0 %257
  %261 = vset.pattern.permute.xlu0 0
  %262 = vperm.xlu0 %261, %v254
  %v263 = vpop.permute.xlu0 %262
  %vm265 = vcmask 195584
  %v267 = vsel %vm265, %v251, 0
  %v270 = vsel %vm265, %v252, 0
  %272 = vmatprep.subr.mxu0 0.0
  %273 = vmatpush1.msra.mxu0 0.0
  %274 = vmatprep.subr.mxu0 0.0
  %275 = vmatpush1.msra.mxu0 0.0
  %276 = vmatprep.subr.mxu0 0.0
  %277 = vmatpush1.msra.mxu0 0.0
  %278 = vmatprep.subr.mxu0 0.0
  %279 = vmatpush1.msra.mxu0 0.0
  %280 = vmatprep.subr.mxu0 0.0
  %281 = vmatpush1.msra.mxu0 0.0
  %282 = vmatprep.subr.mxu0 0.0
  %283 = vmatpush1.msra.mxu0 0.0
  %284 = vmatprep.subr.mxu0 0.0
  %285 = vmatpush1.msra.mxu0 0.0
  %286 = vmatprep.subr.mxu0 0.0
  %287 = vmatpush1.msra.mxu0 0.0
  %288 = vmatprep.subr.mxu0 0.0
  %289 = vmatpush1.msra.mxu0 0.0
  %290 = vmatprep.subr.mxu0 0.0
  %291 = vmatpush1.msra.mxu0 0.0
  %292 = vmatprep.subr.mxu0 0.0
  %293 = vmatpush1.msra.mxu0 0.0
  %294 = vmatprep.subr.mxu0 0.0
  %295 = vmatpush1.msra.mxu0 0.0
  %296 = vmatprep.subr.mxu0 0.0
  %297 = vmatpush1.msra.mxu0 0.0
  %298 = vmatprep.subr.mxu0 0.0
  %299 = vmatpush1.msra.mxu0 %v250
  %300 = vmatprep.subr.mxu0 0.0
  %301 = vmatpush1.msra.mxu0 %v249
  %302 = vmatprep.subr.mxu0 0.0
  %303 = vmatpush1.msra.mxu0 %v248
  %304 = vmatprep.subr.mxu0 0.0
  %305 = vmatpush2.msra.mxu0 0.0
  %306 = vmatprep.subr.mxu0 0.0
  %307 = vmatpush2.msra.mxu0 0.0
  %308 = vmatprep.subr.mxu0 0.0
  %309 = vmatpush2.msra.mxu0 0.0
  %310 = vmatprep.subr.mxu0 0.0
  %311 = vmatpush2.msra.mxu0 0.0
  %312 = vmatprep.subr.mxu0 0.0
  %313 = vmatpush2.msra.mxu0 0.0
  %314 = vmatprep.subr.mxu0 0.0
  %315 = vmatpush2.msra.mxu0 0.0
  %316 = vmatprep.subr.mxu0 0.0
  %317 = vmatpush2.msra.mxu0 0.0
  %318 = vmatprep.subr.mxu0 0.0
  %319 = vmatpush2.msra.mxu0 0.0
  %320 = vmatprep.subr.mxu0 0.0
  %321 = vmatpush2.msra.mxu0 0.0
  %322 = vmatprep.subr.mxu0 0.0
  %323 = vmatpush2.msra.mxu0 0.0
  %324 = vmatprep.subr.mxu0 0.0
  %325 = vmatpush2.msra.mxu0 0.0
  %326 = vmatprep.subr.mxu0 0.0
  %327 = vmatpush2.msra.mxu0 0.0
  %328 = vmatprep.subr.mxu0 0.0
  %329 = vmatpush2.msra.mxu0 0.0
  %330 = vmatprep.subr.mxu0 0.0
  %331 = vmatpush2.msra.mxu0 0.0
  %332 = vmatprep.subr.mxu0 0.0
  %333 = vmatpush2.msra.mxu0 0.0
  %334 = vmatprep.subr.mxu0 0.0
  %335 = vmatpush2.msra.mxu0 0.0
  %336 = vmatprep.mubr.f32.mxu0 0.0
  %337 = vmatmul.mubr.f32.gmra.mxu0 %v267
  %v338 = vpop.f32.mrf.mxu0
  %v339 = vadd.f32 %v258, %v338
  %v340 = vpop.f32.mrf.mxu0
  %341 = vmatprep.mubr.f32.mxu0 0.0
  %342 = vmatmul.mubr.f32.gmra.mxu0 %v270
  %v343 = vpop.f32.mrf.mxu0
  %v344 = vadd.f32 %v263, %v343
  %v345 = vpop.f32.mrf.mxu0
  %346 = vdwg.mxu0
  %v347 = vmul.f32 %v339, 0.5
  %v348 = vmul.f32 %v344, 0.5
  %v349 = vtanh.pop %v347
  %v350 = vtanh.pop %v348
  %v351 = vadd.f32 %v349, 1.0
  %v352 = vadd.f32 %v350, 1.0
  %v353 = vmul.f32 %v351, 0.5
  %v354 = vmul.f32 %v352, 0.5
  %vm355 = vcmask 64512
  %356 = vst.msk [vmem:[%s7] sm:$0xff] %vm355, %v353
  %vm357 = vcmask 58368
  %358 = vst.msk [vmem:[%s7 + $0x8] sm:$0x3] %vm357, %v354
  // Predicated region
  $region30: #{tpu_custom_call.1} parent=0 // pred_check
    _
  $region31: #{tpu_custom_call.1} parent=0 // pred_check_branch
    %360 = sbr.rel (0) target = $region33
  $region32: #{tpu_custom_call.1} parent=0 // pred_region
    _
  $region33: #{tpu_custom_call.1} parent=0 // pred_fallthru
    _
  // Predicated region
  $region34: #{tpu_custom_call.1} parent=0 // pred_check
    _
  $region35: #{tpu_custom_call.1} parent=0 // pred_check_branch
    %362 = sbr.rel (0) target = $region37
  $region36: #{tpu_custom_call.1} parent=0 // pred_region
    _
  $region37: #{tpu_custom_call.1} parent=0 // pred_fallthru
    _

</llo_original>
